<compile_context>
chip_gen: v6e
topology: v6e:2x2x1
jax: 0.10.0
libtpu: 0.0.40
codegen_flags: <defaults>
</compile_context>

<pallas_src>
import jax
import jax.numpy as jnp
from jax.experimental import pallas as pl
from jax.experimental.pallas import tpu as pltpu


def predict_kernel(src_ref, dst_ref, w1a_ref, w1b_ref, b1_ref, w2_ref, b2_ref,
                   out_ref):
    # hidden = relu(concat(src, dst) @ W1 + b1)   -- f32 accumulation on MXU.
    h = jnp.dot(src_ref[...], w1a_ref[...], preferred_element_type=jnp.float32)
    h = h + jnp.dot(dst_ref[...], w1b_ref[...],
                    preferred_element_type=jnp.float32)
    h = jnp.maximum(h + b1_ref[...], 0.0)                     # (tm, H) f32

    # out = hidden @ W2 + b2, done off the MXU as a VPU multiply + lane
    # reduction (w2_ref is W2 transposed: shape (1, H); b2 is an SMEM scalar).
    scores = jnp.sum(h * w2_ref[...], axis=-1) + b2_ref[0]    # (tm,)

    # Lane-dense store: one (1, tm) row per grid step.
    out_ref[...] = scores[None, :].astype(out_ref.dtype)


def predict_layer(src_emb, dst_emb, params, *, tm=512):
    """src_emb, dst_emb: (N, E). Returns (N, 1) float32.

    tm is the batch-row tile processed per grid step (tuning knob).  It must
    be a multiple of 16 (bf16 sublane packing); multiples of 128 are best for
    lane-dense output stores.  Pick the largest value the VMEM budget allows
    (512-2048 typical; keep 2*2*tm*E*2B + weights under ~48 MiB on v7x).
    """
    w1a, w1b, b1, w2t, b2 = params
    N, E = src_emb.shape
    H = E // 4
    assert w1a.shape == (E, H) and w1b.shape == (E, H)
    assert b1.shape == (1, H) and w2t.shape == (1, H) and b2.shape == (1,)
    assert tm % 16 == 0, "tm must be a multiple of 16 (bf16 sublane packing)"

    # Pad the batch up to a multiple of tm (cheap relative to the big-tile win).
    grid_n = pl.cdiv(N, tm)
    n_pad = grid_n * tm
    if n_pad != N:
        pad = n_pad - N
        src_emb = jnp.pad(src_emb, ((0, pad), (0, 0)))
        dst_emb = jnp.pad(dst_emb, ((0, pad), (0, 0)))

    # Stream activations / W1 as bf16 (mem-bound kernel); small params stay f32.
    src_bf = src_emb.astype(jnp.bfloat16)
    dst_bf = dst_emb.astype(jnp.bfloat16)
    w1a_bf = w1a.astype(jnp.bfloat16)
    w1b_bf = w1b.astype(jnp.bfloat16)
    b1_f = b1.astype(jnp.float32)
    w2_f = w2t.astype(jnp.float32)
    b2_f = b2.astype(jnp.float32)

    row_tile = lambda i: (i, 0)
    full = lambda i: (0, 0)
    out_tile = lambda i: (i, 0, 0)

    cost = pl.CostEstimate(
        flops=int(4 * n_pad * E * H + 3 * n_pad * H),
        transcendentals=0,
        bytes_accessed=int(2 * n_pad * E * 2 + n_pad * 4
                           + 2 * E * H * 2 + (2 * H + 1) * 4),
    )

    # NOTE: the constant-index weight blocks are tiny; their default double
    # buffering costs negligible VMEM, so we leave pipeline_mode alone.
    out_tiles = pl.pallas_call(
        predict_kernel,
        out_shape=jax.ShapeDtypeStruct((grid_n, 1, tm), jnp.float32),
        grid_spec=pltpu.PrefetchScalarGridSpec(
            num_scalar_prefetch=0,
            grid=(grid_n,),
            in_specs=[
                pl.BlockSpec((tm, E), row_tile),                    # src (bf16)
                pl.BlockSpec((tm, E), row_tile),                    # dst (bf16)
                pl.BlockSpec((E, H), full),                         # W1 src half
                pl.BlockSpec((E, H), full),                         # W1 dst half
                pl.BlockSpec((1, H), full),                         # b1
                pl.BlockSpec((1, H), full),                         # W2^T
                pl.BlockSpec(memory_space=pltpu.MemorySpace.SMEM),  # b2 scalar
            ],
            out_specs=pl.BlockSpec((None, 1, tm), out_tile),        # lane-dense
        ),
        compiler_params=pltpu.CompilerParams(
            dimension_semantics=("parallel",),
            vmem_limit_bytes=48 * 1024 * 1024,
        ),
        cost_estimate=cost,
    )(src_bf, dst_bf, w1a_bf, w1b_bf, b1_f, w2_f, b2_f)

    # (grid_n, 1, tm) lane-dense slab -> (N, 1)
    return out_tiles.reshape(grid_n * tm, 1)[:N]


def init_params(key, emb_sz):
    """Deterministic synthetic params matching nn.Linear(2E, E//4), nn.Linear(E//4, 1)."""
    H = emb_sz // 4
    k1, k2, k3, k4 = jax.random.split(key, 4)
    # PyTorch Linear stores W as (out, in); we keep the (in, out) transpose so
    # the kernel computes x @ W + b.  W2 is stored transposed as a (1, H) row.
    bound1 = 1.0 / jnp.sqrt(2.0 * emb_sz)
    w1 = jax.random.uniform(k1, (2 * emb_sz, H), jnp.float32, -bound1, bound1)
    b1 = jax.random.uniform(k2, (1, H), jnp.float32, -bound1, bound1)
    bound2 = 1.0 / jnp.sqrt(float(H))
    w2t = jax.random.uniform(k3, (1, H), jnp.float32, -bound2, bound2)
    b2 = jax.random.uniform(k4, (1,), jnp.float32, -bound2, bound2)
    w1a, w1b = w1[:emb_sz], w1[emb_sz:]
    return (w1a, w1b, b1, w2t, b2)


def reference(src_emb, dst_emb, params):
    w1a, w1b, b1, w2t, b2 = params
    x = jnp.concatenate([src_emb, dst_emb], axis=1)
    w1 = jnp.concatenate([w1a, w1b], axis=0)
    h = jax.nn.relu(x @ w1 + b1)
    return h @ w2t.T + b2[None, :]


if __name__ == "__main__":
    key = jax.random.PRNGKey(0)
    k_src, k_dst, k_par = jax.random.split(key, 3)

    # batch=200 (deliberately not a multiple of the tile), emb_sz=64 -> hidden=16
    N, E = 200, 64
    src = jax.random.normal(k_src, (N, E), jnp.float32)
    dst = jax.random.normal(k_dst, (N, E), jnp.float32)
    params = init_params(k_par, E)

    # Small tm for the small demo (pads 200 -> 256, grid of 2 steps).
    out = predict_layer(src, dst, params, tm=128)
    out = jax.block_until_ready(out)

    ref = reference(src, dst, params)
    assert out.shape == (N, 1)
    # bf16 input streaming -> compare against the f32 reference with a loose tol.
    max_err = float(jnp.max(jnp.abs(out - ref)))
    assert jnp.allclose(out, ref, atol=2e-2, rtol=2e-2), max_err

    print("KERNEL_OK")
</pallas_src>

<mosaic_0001>
module attributes {stable_mosaic.version = 11 : i64} {
  func.func @predict_kernel(%arg0: i32, %arg1: memref<128x64xbf16, #tpu.memory_space<vmem>>, %arg2: memref<128x64xbf16, #tpu.memory_space<vmem>>, %arg3: memref<64x16xbf16, #tpu.memory_space<vmem>>, %arg4: memref<64x16xbf16, #tpu.memory_space<vmem>>, %arg5: memref<1x16xf32, #tpu.memory_space<vmem>>, %arg6: memref<1x16xf32, #tpu.memory_space<vmem>>, %arg7: memref<1xf32, #tpu.memory_space<smem>>, %arg8: memref<1x1x128xf32, #tpu.memory_space<vmem>>) attributes {dimension_semantics = [#tpu.dimension_semantics<parallel>], iteration_bounds = array<i64: 2>, scalar_prefetch = 0 : i64, scratch_operands = 0 : i64, tpu.core_type = #tpu.core_type<tc>, window_params = [{transform_indices = @transform_0, window_bounds = array<i64: 128, 64>}, {transform_indices = @transform_1, window_bounds = array<i64: 128, 64>}, {pipeline_mode = #tpu.pipeline_mode<synchronous>, transform_indices = @transform_2, window_bounds = array<i64: 64, 16>}, {pipeline_mode = #tpu.pipeline_mode<synchronous>, transform_indices = @transform_3, window_bounds = array<i64: 64, 16>}, {pipeline_mode = #tpu.pipeline_mode<synchronous>, transform_indices = @transform_4, window_bounds = array<i64: 1, 16>}, {pipeline_mode = #tpu.pipeline_mode<synchronous>, transform_indices = @transform_5, window_bounds = array<i64: 1, 16>}, {transform_indices = @transform_6, window_bounds = array<i64: 1>}, {transform_indices = @transform_7, window_bounds = array<i64: 1, 1, 128>}]} {
    %c0 = arith.constant 0 : index
    %c0_0 = arith.constant 0 : index
    %0 = vector.load %arg1[%c0, %c0_0] : memref<128x64xbf16, #tpu.memory_space<vmem>>, vector<128x64xbf16>
    %c0_1 = arith.constant 0 : index
    %c0_2 = arith.constant 0 : index
    %1 = vector.load %arg3[%c0_1, %c0_2] : memref<64x16xbf16, #tpu.memory_space<vmem>>, vector<64x16xbf16>
    %cst = arith.constant dense<0.000000e+00> : vector<128x16xf32>
    %2 = tpu.matmul %0, %1, %cst {dimension_numbers = #tpu.dot_dimension_numbers<[1], [0], [0], [1], [0, 0, 1, 1], [], []>} : vector<128x64xbf16>, vector<64x16xbf16>, vector<128x16xf32> -> vector<128x16xf32>
    %c0_3 = arith.constant 0 : index
    %c0_4 = arith.constant 0 : index
    %3 = vector.load %arg2[%c0_3, %c0_4] : memref<128x64xbf16, #tpu.memory_space<vmem>>, vector<128x64xbf16>
    %c0_5 = arith.constant 0 : index
    %c0_6 = arith.constant 0 : index
    %4 = vector.load %arg4[%c0_5, %c0_6] : memref<64x16xbf16, #tpu.memory_space<vmem>>, vector<64x16xbf16>
    %cst_7 = arith.constant dense<0.000000e+00> : vector<128x16xf32>
    %5 = tpu.matmul %3, %4, %cst_7 {dimension_numbers = #tpu.dot_dimension_numbers<[1], [0], [0], [1], [0, 0, 1, 1], [], []>} : vector<128x64xbf16>, vector<64x16xbf16>, vector<128x16xf32> -> vector<128x16xf32>
    %6 = arith.addf %2, %5 : vector<128x16xf32>
    %c0_8 = arith.constant 0 : index
    %c0_9 = arith.constant 0 : index
    %7 = vector.load %arg5[%c0_8, %c0_9] : memref<1x16xf32, #tpu.memory_space<vmem>>, vector<1x16xf32>
    %8 = vector.broadcast %7 : vector<1x16xf32> to vector<128x16xf32>
    %9 = arith.addf %6, %8 : vector<128x16xf32>
    %cst_10 = arith.constant 0.000000e+00 : f32
    %10 = vector.broadcast %cst_10 : f32 to vector<128x16xf32>
    %11 = arith.maximumf %9, %10 : vector<128x16xf32>
    %c0_11 = arith.constant 0 : index
    %c0_12 = arith.constant 0 : index
    %12 = vector.load %arg6[%c0_11, %c0_12] : memref<1x16xf32, #tpu.memory_space<vmem>>, vector<1x16xf32>
    %13 = vector.broadcast %12 : vector<1x16xf32> to vector<128x16xf32>
    %14 = arith.mulf %11, %13 : vector<128x16xf32>
    %cst_13 = arith.constant dense<0.000000e+00> : vector<128xf32>
    %15 = vector.multi_reduction <add>, %14, %cst_13 [1] : vector<128x16xf32> to vector<128xf32>
    %c0_14 = arith.constant 0 : index
    %16 = memref.load %arg7[%c0_14] : memref<1xf32, #tpu.memory_space<smem>>
    %17 = vector.broadcast %16 : f32 to vector<128xf32>
    %18 = arith.addf %15, %17 : vector<128xf32>
    %19 = vector.shape_cast %18 : vector<128xf32> to vector<1x128xf32>
    %c0_15 = arith.constant 0 : index
    %c0_16 = arith.constant 0 : index
    %c0_17 = arith.constant 0 : index
    %20 = vector.load %arg8[%c0_15, %c0_16, %c0_17] : memref<1x1x128xf32, #tpu.memory_space<vmem>>, vector<1x1x128xf32>
    %21 = vector.shape_cast %20 : vector<1x1x128xf32> to vector<1x128xf32>
    %22 = vector.shape_cast %19 : vector<1x128xf32> to vector<1x1x128xf32>
    tpu.vector_store %arg8[%c0_15, %c0_16, %c0_17], %22 {strides = array<i32>} : memref<1x1x128xf32, #tpu.memory_space<vmem>>, vector<1x1x128xf32>,
    return
  }
  func.func @transform_0(%arg0: i32) -> (i32, i32) {
    %c0_i32 = arith.constant 0 : i32
    %c0_i32_0 = arith.constant 0 : i32
    return %arg0, %c0_i32 : i32, i32
  }
  func.func @transform_1(%arg0: i32) -> (i32, i32) {
    %c0_i32 = arith.constant 0 : i32
    %c0_i32_0 = arith.constant 0 : i32
    return %arg0, %c0_i32 : i32, i32
  }
  func.func @transform_2(%arg0: i32) -> (i32, i32) {
    %c0_i32 = arith.constant 0 : i32
    %c0_i32_0 = arith.constant 0 : i32
    %c0_i32_1 = arith.constant 0 : i32
    return %c0_i32, %c0_i32_0 : i32, i32
  }
  func.func @transform_3(%arg0: i32) -> (i32, i32) {
    %c0_i32 = arith.constant 0 : i32
    %c0_i32_0 = arith.constant 0 : i32
    %c0_i32_1 = arith.constant 0 : i32
    return %c0_i32, %c0_i32_0 : i32, i32
  }
  func.func @transform_4(%arg0: i32) -> (i32, i32) {
    %c0_i32 = arith.constant 0 : i32
    %c0_i32_0 = arith.constant 0 : i32
    %c0_i32_1 = arith.constant 0 : i32
    return %c0_i32, %c0_i32_0 : i32, i32
  }
  func.func @transform_5(%arg0: i32) -> (i32, i32) {
    %c0_i32 = arith.constant 0 : i32
    %c0_i32_0 = arith.constant 0 : i32
    %c0_i32_1 = arith.constant 0 : i32
    return %c0_i32, %c0_i32_0 : i32, i32
  }
  func.func @transform_6(%arg0: i32) -> i32 {
    %c0_i32 = arith.constant 0 : i32
    %c0_i32_0 = arith.constant 0 : i32
    return %c0_i32 : i32
  }
  func.func @transform_7(%arg0: i32) -> (i32, i32, i32) {
    %c0_i32 = arith.constant 0 : i32
    %c0_i32_0 = arith.constant 0 : i32
    %c0_i32_1 = arith.constant 0 : i32
    return %arg0, %c0_i32, %c0_i32_0 : i32, i32, i32
  }
}

</mosaic_0001>

<llo_original>
// kernel: tpu_custom_call.1
$region0: #{tpu_custom_call.1}
  #allocation0 [shape = 'u32[]', space=smem, size = 0x4, offset = 0x4, fixed_abs, tag = 'smem constant byte address 0x4 - core index']
  #allocation1 [shape = 'u32[144,128]{1,0:T(1,128)}', space=vmem, size = 0x12000, scoped, tag = 'internal scratch']
  #allocation2 [shape = 'f32[1]{0:T(128)S(6)}', space=smem, size = 0x200, scoped, tag = 'scoped memory for tpu_custom_call.1']
  %s0 = inlined_call_operand.vmem [shape: bf16[256,64], index: 0, kind: input, shape index: {}]
  %s1 = inlined_call_operand.vmem [shape: bf16[256,64], index: 1, kind: input, shape index: {}]
  %s2 = inlined_call_operand.vmem [shape: bf16[64,16], index: 2, kind: input, shape index: {}]
  %s3 = inlined_call_operand.vmem [shape: bf16[64,16], index: 3, kind: input, shape index: {}]
  %s4 = inlined_call_operand.vmem [shape: f32[1,16], index: 4, kind: input, shape index: {}]
  %s5 = inlined_call_operand.vmem [shape: f32[1,16], index: 5, kind: input, shape index: {}]
  %s6 = inlined_call_operand.<no memory space> [shape: f32[1], index: 6, kind: input, shape index: {}]
  %s7 = inlined_call_operand.hbm [shape: f32[2,1,128], index: 7, kind: output, shape index: {}]
  %s8 = sld [smem:[#allocation0]]
  $region61: #{tpu_custom_call.1} parent=0
    _
  %s10 = ssub.s32 1, %s8
  %s11 = scalar_select 0, %s10, %s8
  %12 = sst [smem:[#allocation2]] %s6
  $region1: #{tpu_custom_call.1} parent=0
    #allocation3 [shape = 'u8[1024]{0}', space=vmem, size = 0x400, scoped, tag = 'output window, operand 0']
    #allocation4 [shape = 's32[2]{0}', space=sflag, size = 0x8, scoped, tag = 'scoped memory for tpu_custom_call.1']
    %13 = vsyncpa [#allocation4], 0
    %s14 = scalar_lea.sflag [#allocation4], 1
    %15 = vsyncpa %s14, 0
    loop: start=0, step=1, limit=4
    $region2: #{tpu_custom_call.1} parent=1 // loop_pre_header
      _
    $region3: #{tpu_custom_call.1} parent=1 // loop_header
      %s17 = sphi 0, %s21
      %p18 = scmp.ge.s32.totalorder %s17, 4
      %s27 = sphi 0, %s29
      %s30 = sphi 0, %s27
      %s31 = sphi 0, %s30
      %s47 = sphi 0, %s31
      %s53 = sphi 0, %s55
      %s56 = sphi 0, %s53
      %s57 = sphi 0, %s56
      %s73 = sphi 0, %s57
      %s77 = sphi 0, %s77
      %s79 = sphi 0, %s77
      %s80 = sphi 0, %s79
      %s94 = sphi 0, %s80
      %s98 = sphi 0, %s98
      %s100 = sphi 0, %s98
      %s101 = sphi 0, %s100
      %s115 = sphi 0, %s101
      %s119 = sphi 0, %s119
      %s121 = sphi 0, %s119
      %s122 = sphi 0, %s121
      %s136 = sphi 0, %s122
      %s140 = sphi 0, %s140
      %s142 = sphi 0, %s140
      %s143 = sphi 0, %s142
      %s157 = sphi 0, %s143
      %s161 = sphi 0, %s161
      %s163 = sphi 0, %s161
      %s164 = sphi 0, %s163
      %s178 = sphi 0, %s164
      %s184 = sphi 0, %s186
      %s187 = sphi 0, %s184
      %s188 = sphi 0, %s187
      %s204 = sphi 0, %s188
    $region4: #{tpu_custom_call.1} parent=1 // loop_header_branch
      %20 = sbr.rel (%p18) target = $region8
    $region5: #{tpu_custom_call.1} parent=1 // loop_body
      %s22 = ssub.s32 %s17, 1
      %s23 = ssub.s32 %s17, 2
      %s24 = sadd.s32 %s17, 1
      %s25 = ssub.s32 %s17, %s24
      %p26 = scmp.eq.s32.totalorder %s25, 0
      %s28 = sadd.s32 %s27, 1
      %s29 = scalar_select %p26, %s27, %s28
      %p32 = pneg %p26
      %p33 = scmp.eq.s32.totalorder %s17, 1
      %p34 = por %p32, %p33
      %p35 = scmp.ne.s32.totalorder %s27, %s30
      %p36 = scmp.eq.s32.totalorder %s17, 0
      %p37 = por %p35, %p36
      %p38 = scmp.ne.s32.totalorder %s27, %s30
      %p39 = scmp.eq.s32.totalorder %s22, 1
      %p40 = por %p38, %p39
      %p41 = scmp.ne.s32.totalorder %s30, %s31
      %p42 = scmp.eq.s32.totalorder %s22, 0
      %p43 = por %p41, %p42
      %p44 = scmp.ne.s32.totalorder %s30, %s31
      %p45 = scmp.eq.s32.totalorder %s23, 1
      %p46 = por %p44, %p45
      %p48 = scmp.ne.s32.totalorder %s31, %s47
      %p49 = scmp.eq.s32.totalorder %s23, 0
      %p50 = por %p48, %p49
      %s51 = ssub.s32 %s17, %s24
      %p52 = scmp.eq.s32.totalorder %s51, 0
      %s54 = sadd.s32 %s53, 1
      %s55 = scalar_select %p52, %s53, %s54
      %p58 = pneg %p52
      %p59 = scmp.eq.s32.totalorder %s17, 1
      %p60 = por %p58, %p59
      %p61 = scmp.ne.s32.totalorder %s53, %s56
      %p62 = scmp.eq.s32.totalorder %s17, 0
      %p63 = por %p61, %p62
      %p64 = scmp.ne.s32.totalorder %s53, %s56
      %p65 = scmp.eq.s32.totalorder %s22, 1
      %p66 = por %p64, %p65
      %p67 = scmp.ne.s32.totalorder %s56, %s57
      %p68 = scmp.eq.s32.totalorder %s22, 0
      %p69 = por %p67, %p68
      %p70 = scmp.ne.s32.totalorder %s56, %s57
      %p71 = scmp.eq.s32.totalorder %s23, 1
      %p72 = por %p70, %p71
      %p74 = scmp.ne.s32.totalorder %s57, %s73
      %p75 = scmp.eq.s32.totalorder %s23, 0
      %p76 = por %p74, %p75
      %s78 = sadd.s32 %s77, 1
      %p81 = scmp.eq.s32.totalorder %s17, 1
      %p82 = scmp.ne.s32.totalorder %s77, %s79
      %p83 = scmp.eq.s32.totalorder %s17, 0
      %p84 = por %p82, %p83
      %p85 = scmp.ne.s32.totalorder %s77, %s79
      %p86 = scmp.eq.s32.totalorder %s22, 1
      %p87 = por %p85, %p86
      %p88 = scmp.ne.s32.totalorder %s79, %s80
      %p89 = scmp.eq.s32.totalorder %s22, 0
      %p90 = por %p88, %p89
      %p91 = scmp.ne.s32.totalorder %s79, %s80
      %p92 = scmp.eq.s32.totalorder %s23, 1
      %p93 = por %p91, %p92
      %p95 = scmp.ne.s32.totalorder %s80, %s94
      %p96 = scmp.eq.s32.totalorder %s23, 0
      %p97 = por %p95, %p96
      %s99 = sadd.s32 %s98, 1
      %p102 = scmp.eq.s32.totalorder %s17, 1
      %p103 = scmp.ne.s32.totalorder %s98, %s100
      %p104 = scmp.eq.s32.totalorder %s17, 0
      %p105 = por %p103, %p104
      %p106 = scmp.ne.s32.totalorder %s98, %s100
      %p107 = scmp.eq.s32.totalorder %s22, 1
      %p108 = por %p106, %p107
      %p109 = scmp.ne.s32.totalorder %s100, %s101
      %p110 = scmp.eq.s32.totalorder %s22, 0
      %p111 = por %p109, %p110
      %p112 = scmp.ne.s32.totalorder %s100, %s101
      %p113 = scmp.eq.s32.totalorder %s23, 1
      %p114 = por %p112, %p113
      %p116 = scmp.ne.s32.totalorder %s101, %s115
      %p117 = scmp.eq.s32.totalorder %s23, 0
      %p118 = por %p116, %p117
      %s120 = sadd.s32 %s119, 1
      %p123 = scmp.eq.s32.totalorder %s17, 1
      %p124 = scmp.ne.s32.totalorder %s119, %s121
      %p125 = scmp.eq.s32.totalorder %s17, 0
      %p126 = por %p124, %p125
      %p127 = scmp.ne.s32.totalorder %s119, %s121
      %p128 = scmp.eq.s32.totalorder %s22, 1
      %p129 = por %p127, %p128
      %p130 = scmp.ne.s32.totalorder %s121, %s122
      %p131 = scmp.eq.s32.totalorder %s22, 0
      %p132 = por %p130, %p131
      %p133 = scmp.ne.s32.totalorder %s121, %s122
      %p134 = scmp.eq.s32.totalorder %s23, 1
      %p135 = por %p133, %p134
      %p137 = scmp.ne.s32.totalorder %s122, %s136
      %p138 = scmp.eq.s32.totalorder %s23, 0
      %p139 = por %p137, %p138
      %s141 = sadd.s32 %s140, 1
      %p144 = scmp.eq.s32.totalorder %s17, 1
      %p145 = scmp.ne.s32.totalorder %s140, %s142
      %p146 = scmp.eq.s32.totalorder %s17, 0
      %p147 = por %p145, %p146
      %p148 = scmp.ne.s32.totalorder %s140, %s142
      %p149 = scmp.eq.s32.totalorder %s22, 1
      %p150 = por %p148, %p149
      %p151 = scmp.ne.s32.totalorder %s142, %s143
      %p152 = scmp.eq.s32.totalorder %s22, 0
      %p153 = por %p151, %p152
      %p154 = scmp.ne.s32.totalorder %s142, %s143
      %p155 = scmp.eq.s32.totalorder %s23, 1
      %p156 = por %p154, %p155
      %p158 = scmp.ne.s32.totalorder %s143, %s157
      %p159 = scmp.eq.s32.totalorder %s23, 0
      %p160 = por %p158, %p159
      %s162 = sadd.s32 %s161, 1
      %p165 = scmp.eq.s32.totalorder %s17, 1
      %p166 = scmp.ne.s32.totalorder %s161, %s163
      %p167 = scmp.eq.s32.totalorder %s17, 0
      %p168 = por %p166, %p167
      %p169 = scmp.ne.s32.totalorder %s161, %s163
      %p170 = scmp.eq.s32.totalorder %s22, 1
      %p171 = por %p169, %p170
      %p172 = scmp.ne.s32.totalorder %s163, %s164
      %p173 = scmp.eq.s32.totalorder %s22, 0
      %p174 = por %p172, %p173
      %p175 = scmp.ne.s32.totalorder %s163, %s164
      %p176 = scmp.eq.s32.totalorder %s23, 1
      %p177 = por %p175, %p176
      %p179 = scmp.ne.s32.totalorder %s164, %s178
      %p180 = scmp.eq.s32.totalorder %s23, 0
      %p181 = por %p179, %p180
      %s182 = ssub.s32 %s17, %s24
      %p183 = scmp.eq.s32.totalorder %s182, 0
      %s185 = sadd.s32 %s184, 1
      %s186 = scalar_select %p183, %s184, %s185
      %p189 = pneg %p183
      %p190 = scmp.eq.s32.totalorder %s17, 1
      %p191 = por %p189, %p190
      %p192 = scmp.ne.s32.totalorder %s184, %s187
      %p193 = scmp.eq.s32.totalorder %s17, 0
      %p194 = por %p192, %p193
      %p195 = scmp.ne.s32.totalorder %s184, %s187
      %p196 = scmp.eq.s32.totalorder %s22, 1
      %p197 = por %p195, %p196
      %p198 = scmp.ne.s32.totalorder %s187, %s188
      %p199 = scmp.eq.s32.totalorder %s22, 0
      %p200 = por %p198, %p199
      %p201 = scmp.ne.s32.totalorder %s187, %s188
      %p202 = scmp.eq.s32.totalorder %s23, 1
      %p203 = por %p201, %p202
      %p205 = scmp.ne.s32.totalorder %s188, %s204
      %p206 = scmp.eq.s32.totalorder %s23, 0
      %p207 = por %p205, %p206
      %p208 = scmp.le.s32.totalorder 1, %s17
      %p209 = scmp.lt.s32.totalorder %s17, 3
      %p210 = pnand %p208, %p209
      %p211 = pneg %p210
      // Predicated region
      $region9: #{tpu_custom_call.1} parent=5 // pred_check
        _
      $region10: #{tpu_custom_call.1} parent=5 // pred_check_branch
        %213 = sbr.rel (%p210) target = $region12
      $region11: #{tpu_custom_call.1} parent=5 // pred_region
        %s214 = ssub.s32 %s17, 1
        // Predicated region
        $region13: #{tpu_custom_call.1} parent=11 // pred_check
          %p215 = pneg %p90
        $region14: #{tpu_custom_call.1} parent=11 // pred_check_branch
          %217 = sbr.rel (%p215) target = $region16
        $region15: #{tpu_custom_call.1} parent=11 // pred_region
          _
        $region16: #{tpu_custom_call.1} parent=11 // pred_fallthru
          _
        // Predicated region
        $region17: #{tpu_custom_call.1} parent=11 // pred_check
          %p218 = pneg %p111
        $region18: #{tpu_custom_call.1} parent=11 // pred_check_branch
          %220 = sbr.rel (%p218) target = $region20
        $region19: #{tpu_custom_call.1} parent=11 // pred_region
          _
        $region20: #{tpu_custom_call.1} parent=11 // pred_fallthru
          _
        // Predicated region
        $region21: #{tpu_custom_call.1} parent=11 // pred_check
          %p221 = pneg %p132
        $region22: #{tpu_custom_call.1} parent=11 // pred_check_branch
          %223 = sbr.rel (%p221) target = $region24
        $region23: #{tpu_custom_call.1} parent=11 // pred_region
          _
        $region24: #{tpu_custom_call.1} parent=11 // pred_fallthru
          _
        // Predicated region
        $region25: #{tpu_custom_call.1} parent=11 // pred_check
          %p224 = pneg %p153
        $region26: #{tpu_custom_call.1} parent=11 // pred_check_branch
          %226 = sbr.rel (%p224) target = $region28
        $region27: #{tpu_custom_call.1} parent=11 // pred_region
          _
        $region28: #{tpu_custom_call.1} parent=11 // pred_fallthru
          _
        // Predicated region
        $region29: #{tpu_custom_call.1} parent=11 // pred_check
          %p227 = pneg %p174
        $region30: #{tpu_custom_call.1} parent=11 // pred_check_branch
          %229 = sbr.rel (%p227) target = $region32
        $region31: #{tpu_custom_call.1} parent=11 // pred_region
          _
        $region32: #{tpu_custom_call.1} parent=11 // pred_fallthru
          _
      $region12: #{tpu_custom_call.1} parent=5 // pred_fallthru
        _
      %p230 = scmp.lt.s32.totalorder %s17, 2
      // Predicated region
      $region33: #{tpu_custom_call.1} parent=5 // pred_check
        %p231 = pneg %p230
      $region34: #{tpu_custom_call.1} parent=5 // pred_check_branch
        %233 = sbr.rel (%p231) target = $region36
      $region35: #{tpu_custom_call.1} parent=5 // pred_region
        // Predicated region
        $region37: #{tpu_custom_call.1} parent=35 // pred_check
          %p234 = pneg %p37
        $region38: #{tpu_custom_call.1} parent=35 // pred_check_branch
          %236 = sbr.rel (%p234) target = $region40
        $region39: #{tpu_custom_call.1} parent=35 // pred_region
          %s237 = smul.u32 16, %s17
          %p238 = scmp.lt.s32.totalorder %s237, 31
          %s239 = scalar_select %p238, %s237, 31
          %s240 = smul.addr %s239, 4
          %s241 = scalar_lea.vmem %s0, %s240
          %s242 = smul.u32 16, %s17
        $region40: #{tpu_custom_call.1} parent=35 // pred_fallthru
          _
        // Predicated region
        $region41: #{tpu_custom_call.1} parent=35 // pred_check
          %p243 = pneg %p63
        $region42: #{tpu_custom_call.1} parent=35 // pred_check_branch
          %245 = sbr.rel (%p243) target = $region44
        $region43: #{tpu_custom_call.1} parent=35 // pred_region
          %s246 = smul.u32 16, %s17
          %p247 = scmp.lt.s32.totalorder %s246, 31
          %s248 = scalar_select %p247, %s246, 31
          %s249 = smul.addr %s248, 4
          %s250 = scalar_lea.vmem %s1, %s249
          %s251 = smul.u32 16, %s17
        $region44: #{tpu_custom_call.1} parent=35 // pred_fallthru
          _
      $region36: #{tpu_custom_call.1} parent=5 // pred_fallthru
        _
      %p252 = scmp.le.s32.totalorder 1, %s17
      %p253 = scmp.lt.s32.totalorder %s17, 3
      %p254 = pnand %p252, %p253
      %p255 = pneg %p254
      // Predicated region
      $region45: #{tpu_custom_call.1} parent=5 // pred_check
        _
      $region46: #{tpu_custom_call.1} parent=5 // pred_check_branch
        %257 = sbr.rel (%p254) target = $region48
      $region47: #{tpu_custom_call.1} parent=5 // pred_region
        %s258 = ssub.s32 %s17, 1
        %s259 = smul.u32 16, %s22
        %p260 = scmp.lt.s32.totalorder %s259, 31
        %s261 = scalar_select %p260, %s259, 31
        %s262 = smul.addr %s261, 4
        %s263 = scalar_lea.vmem %s0, %s262
        %p264 = pneg %p43
        %p265 = pneg %p40
        %s266 = smul.u32 16, %s22
        %p267 = scmp.lt.s32.totalorder %s266, 31
        %s268 = scalar_select %p267, %s266, 31
        %s269 = smul.addr %s268, 4
        %s270 = scalar_lea.vmem %s1, %s269
        %p271 = pneg %p69
        %p272 = pneg %p66
        %p273 = pneg %p90
        %p274 = pneg %p87
        %p275 = pneg %p111
        %p276 = pneg %p108
        %p277 = pneg %p132
        %p278 = pneg %p129
        %p279 = pneg %p153
        %p280 = pneg %p150
        %p281 = pneg %p174
        %p282 = pneg %p171
        %p283 = pneg %p200
        %p284 = pneg %p197
        %s285 = sand.u32 %s187, 1
        %s286 = scalar_lea.sflag [#allocation4], %s285
        %s287 = sand.u32 %s187, 1
        %s288 = scalar_lea.vmem [#allocation3], %s287
        %s289 = smul.u32 16, %s22
        %p290 = scmp.lt.s32.totalorder %s289, 31
        %s291 = scalar_select %p290, %s289, 31
        %s292 = smul.addr %s291, 4
        %s293 = scalar_lea.vmem %s0, %s292
        %s294 = smul.u32 16, %s22
        %s295 = smul.u32 16, %s22
        %p296 = scmp.lt.s32.totalorder %s295, 31
        %s297 = scalar_select %p296, %s295, 31
        %s298 = smul.addr %s297, 4
        %s299 = scalar_lea.vmem %s1, %s298
        %s300 = smul.u32 16, %s22
        %v302 = vld [vmem:[%s293] sm:$0xf]
        %v303 = vld [vmem:[%s293 + $0x4] sm:$0xf]
        %v304 = vld [vmem:[%s293 + $0x8] sm:$0xf]
        %v305 = vld [vmem:[%s293 + $0xc] sm:$0xf]
        %v306 = vld [vmem:[%s293 + $0x10] sm:$0xf]
        %v307 = vld [vmem:[%s293 + $0x14] sm:$0xf]
        %v308 = vld [vmem:[%s293 + $0x18] sm:$0xf]
        %v309 = vld [vmem:[%s293 + $0x1c] sm:$0xf]
        %v310 = vld [vmem:[%s293 + $0x20] sm:$0xf]
        %v311 = vld [vmem:[%s293 + $0x24] sm:$0xf]
        %v312 = vld [vmem:[%s293 + $0x28] sm:$0xf]
        %v313 = vld [vmem:[%s293 + $0x2c] sm:$0xf]
        %v314 = vld [vmem:[%s293 + $0x30] sm:$0xf]
        %v315 = vld [vmem:[%s293 + $0x34] sm:$0xf]
        %v316 = vld [vmem:[%s293 + $0x38] sm:$0xf]
        %v317 = vld [vmem:[%s293 + $0x3c] sm:$0xf]
        %v318 = vld [vmem:[%s2] sm:$0xf]
        %v319 = vld [vmem:[%s2 + $0x4] sm:$0xf]
        %v320 = vld [vmem:[%s2 + $0x8] sm:$0xf]
        %v321 = vld [vmem:[%s2 + $0xc] sm:$0xf]
        %v322 = vld [vmem:[%s2 + $0x10] sm:$0xf]
        %v323 = vld [vmem:[%s2 + $0x14] sm:$0xf]
        %v324 = vld [vmem:[%s2 + $0x18] sm:$0xf]
        %v325 = vld [vmem:[%s2 + $0x1c] sm:$0xf]
        %v326 = vld [vmem:[%s299] sm:$0xf]
        %v327 = vld [vmem:[%s299 + $0x4] sm:$0xf]
        %v328 = vld [vmem:[%s299 + $0x8] sm:$0xf]
        %v329 = vld [vmem:[%s299 + $0xc] sm:$0xf]
        %v330 = vld [vmem:[%s299 + $0x10] sm:$0xf]
        %v331 = vld [vmem:[%s299 + $0x14] sm:$0xf]
        %v332 = vld [vmem:[%s299 + $0x18] sm:$0xf]
        %v333 = vld [vmem:[%s299 + $0x1c] sm:$0xf]
        %v334 = vld [vmem:[%s299 + $0x20] sm:$0xf]
        %v335 = vld [vmem:[%s299 + $0x24] sm:$0xf]
        %v336 = vld [vmem:[%s299 + $0x28] sm:$0xf]
        %v337 = vld [vmem:[%s299 + $0x2c] sm:$0xf]
        %v338 = vld [vmem:[%s299 + $0x30] sm:$0xf]
        %v339 = vld [vmem:[%s299 + $0x34] sm:$0xf]
        %v340 = vld [vmem:[%s299 + $0x38] sm:$0xf]
        %v341 = vld [vmem:[%s299 + $0x3c] sm:$0xf]
        %v342 = vld [vmem:[%s3] sm:$0xf]
        %v343 = vld [vmem:[%s3 + $0x4] sm:$0xf]
        %v344 = vld [vmem:[%s3 + $0x8] sm:$0xf]
        %v345 = vld [vmem:[%s3 + $0xc] sm:$0xf]
        %v346 = vld [vmem:[%s3 + $0x10] sm:$0xf]
        %v347 = vld [vmem:[%s3 + $0x14] sm:$0xf]
        %v348 = vld [vmem:[%s3 + $0x18] sm:$0xf]
        %v349 = vld [vmem:[%s3 + $0x1c] sm:$0xf]
        %v366 = vunpack.c.l.b16 %v326
        %v367 = vunpack.c.l.b16 %v327
        %v368 = vunpack.c.l.b16 %v328
        %v369 = vunpack.c.l.b16 %v329
        %v370 = vunpack.c.l.b16 %v330
        %v371 = vunpack.c.l.b16 %v331
        %v372 = vunpack.c.l.b16 %v332
        %v373 = vunpack.c.l.b16 %v333
        %v374 = vunpack.c.l.b16 %v334
        %v375 = vunpack.c.l.b16 %v335
        %v376 = vunpack.c.l.b16 %v336
        %v377 = vunpack.c.l.b16 %v337
        %v378 = vunpack.c.l.b16 %v338
        %v379 = vunpack.c.l.b16 %v339
        %v380 = vunpack.c.l.b16 %v340
        %v381 = vunpack.c.l.b16 %v341
        %v382 = vpack.c.b16 %v367, %v366
        %v383 = vpack.c.b16 %v369, %v368
        %v384 = vpack.c.b16 %v371, %v370
        %v385 = vpack.c.b16 %v373, %v372
        %v386 = vpack.c.b16 %v375, %v374
        %v387 = vpack.c.b16 %v377, %v376
        %v388 = vpack.c.b16 %v379, %v378
        %v389 = vpack.c.b16 %v381, %v380
        %v398 = vunpack.c.l.b16 %v342
        %v399 = vunpack.c.l.b16 %v343
        %v400 = vunpack.c.l.b16 %v344
        %v401 = vunpack.c.l.b16 %v345
        %v402 = vunpack.c.l.b16 %v346
        %v403 = vunpack.c.l.b16 %v347
        %v404 = vunpack.c.l.b16 %v348
        %v405 = vunpack.c.l.b16 %v349
        %v406 = vpack.c.b16 %v399, %v398
        %v407 = vpack.c.b16 %v401, %v400
        %v408 = vpack.c.b16 %v403, %v402
        %v409 = vpack.c.b16 %v405, %v404
        %vm414 = vcmask 523264
        %v416 = vsel %vm414, %v382, 0
        %v419 = vsel %vm414, %v383, 0
        %v422 = vsel %vm414, %v384, 0
        %v425 = vsel %vm414, %v385, 0
        %v428 = vsel %vm414, %v386, 0
        %v431 = vsel %vm414, %v387, 0
        %v434 = vsel %vm414, %v388, 0
        %v437 = vsel %vm414, %v389, 0
        %439 = vmatprep.subr.bf16.mxu0 0
        %440 = vmatpush1.bf16.msra.mxu0 0
        %441 = vmatprep.subr.bf16.mxu0 0
        %442 = vmatpush1.bf16.msra.mxu0 0
        %443 = vmatprep.subr.bf16.mxu0 0
        %444 = vmatpush1.bf16.msra.mxu0 0
        %445 = vmatprep.subr.bf16.mxu0 0
        %446 = vmatpush1.bf16.msra.mxu0 0
        %447 = vmatprep.subr.bf16.mxu0 0
        %448 = vmatpush1.bf16.msra.mxu0 %v409
        %449 = vmatprep.subr.bf16.mxu0 0
        %450 = vmatpush1.bf16.msra.mxu0 %v408
        %451 = vmatprep.subr.bf16.mxu0 0
        %452 = vmatpush1.bf16.msra.mxu0 %v407
        %453 = vmatprep.subr.bf16.mxu0 0
        %454 = vmatpush1.bf16.msra.mxu0 %v406
        %455 = vmatprep.subr.bf16.mxu0 0
        %456 = vmatpush2.bf16.msra.mxu0 0
        %457 = vmatprep.subr.bf16.mxu0 0
        %458 = vmatpush2.bf16.msra.mxu0 0
        %459 = vmatprep.subr.bf16.mxu0 0
        %460 = vmatpush2.bf16.msra.mxu0 0
        %461 = vmatprep.subr.bf16.mxu0 0
        %462 = vmatpush2.bf16.msra.mxu0 0
        %463 = vmatprep.subr.bf16.mxu0 0
        %464 = vmatpush2.bf16.msra.mxu0 0
        %465 = vmatprep.subr.bf16.mxu0 0
        %466 = vmatpush2.bf16.msra.mxu0 0
        %467 = vmatprep.subr.bf16.mxu0 0
        %468 = vmatpush2.bf16.msra.mxu0 0
        %469 = vmatprep.subr.bf16.mxu0 0
        %470 = vmatpush2.bf16.msra.mxu0 0
        %471 = vmatprep.mubr.bf16.mxu0 0
        %472 = vmatmul.mubr.bf16.gmra.mxu0 %v416
        %v473 = vpop.f32.mrf.mxu0
        %v474 = vadd.f32 0.0, %v473
        %v475 = vpop.f32.mrf.mxu0
        %v476 = vpop.f32.mrf.mxu0
        %v477 = vadd.f32 0.0, %v476
        %v478 = vpop.f32.mrf.mxu0
        %479 = vmatprep.mubr.bf16.mxu0 0
        %480 = vmatmul.mubr.bf16.gmra.mxu0 %v419
        %v481 = vpop.f32.mrf.mxu0
        %v482 = vadd.f32 0.0, %v481
        %v483 = vpop.f32.mrf.mxu0
        %v484 = vpop.f32.mrf.mxu0
        %v485 = vadd.f32 0.0, %v484
        %v486 = vpop.f32.mrf.mxu0
        %487 = vmatprep.mubr.bf16.mxu0 0
        %488 = vmatmul.mubr.bf16.gmra.mxu0 %v422
        %v489 = vpop.f32.mrf.mxu0
        %v490 = vadd.f32 0.0, %v489
        %v491 = vpop.f32.mrf.mxu0
        %v492 = vpop.f32.mrf.mxu0
        %v493 = vadd.f32 0.0, %v492
        %v494 = vpop.f32.mrf.mxu0
        %495 = vmatprep.mubr.bf16.mxu0 0
        %496 = vmatmul.mubr.bf16.gmra.mxu0 %v425
        %v497 = vpop.f32.mrf.mxu0
        %v498 = vadd.f32 0.0, %v497
        %v499 = vpop.f32.mrf.mxu0
        %v500 = vpop.f32.mrf.mxu0
        %v501 = vadd.f32 0.0, %v500
        %v502 = vpop.f32.mrf.mxu0
        %503 = vmatprep.mubr.bf16.mxu0 0
        %504 = vmatmul.mubr.bf16.gmra.mxu0 %v428
        %v505 = vpop.f32.mrf.mxu0
        %v506 = vadd.f32 0.0, %v505
        %v507 = vpop.f32.mrf.mxu0
        %v508 = vpop.f32.mrf.mxu0
        %v509 = vadd.f32 0.0, %v508
        %v510 = vpop.f32.mrf.mxu0
        %511 = vmatprep.mubr.bf16.mxu0 0
        %512 = vmatmul.mubr.bf16.gmra.mxu0 %v431
        %v513 = vpop.f32.mrf.mxu0
        %v514 = vadd.f32 0.0, %v513
        %v515 = vpop.f32.mrf.mxu0
        %v516 = vpop.f32.mrf.mxu0
        %v517 = vadd.f32 0.0, %v516
        %v518 = vpop.f32.mrf.mxu0
        %519 = vmatprep.mubr.bf16.mxu0 0
        %520 = vmatmul.mubr.bf16.gmra.mxu0 %v434
        %v521 = vpop.f32.mrf.mxu0
        %v522 = vadd.f32 0.0, %v521
        %v523 = vpop.f32.mrf.mxu0
        %v524 = vpop.f32.mrf.mxu0
        %v525 = vadd.f32 0.0, %v524
        %v526 = vpop.f32.mrf.mxu0
        %527 = vmatprep.mubr.bf16.mxu0 0
        %528 = vmatmul.mubr.bf16.gmra.mxu0 %v437
        %v529 = vpop.f32.mrf.mxu0
        %v530 = vadd.f32 0.0, %v529
        %v531 = vpop.f32.mrf.mxu0
        %v532 = vpop.f32.mrf.mxu0
        %v533 = vadd.f32 0.0, %v532
        %v534 = vpop.f32.mrf.mxu0
        %535 = vdwg.mxu0
        %v552 = vunpack.c.l.b16 %v302
        %v553 = vunpack.c.l.b16 %v303
        %v554 = vunpack.c.l.b16 %v304
        %v555 = vunpack.c.l.b16 %v305
        %v556 = vunpack.c.l.b16 %v306
        %v557 = vunpack.c.l.b16 %v307
        %v558 = vunpack.c.l.b16 %v308
        %v559 = vunpack.c.l.b16 %v309
        %v560 = vunpack.c.l.b16 %v310
        %v561 = vunpack.c.l.b16 %v311
        %v562 = vunpack.c.l.b16 %v312
        %v563 = vunpack.c.l.b16 %v313
        %v564 = vunpack.c.l.b16 %v314
        %v565 = vunpack.c.l.b16 %v315
        %v566 = vunpack.c.l.b16 %v316
        %v567 = vunpack.c.l.b16 %v317
        %v568 = vpack.c.b16 %v553, %v552
        %v569 = vpack.c.b16 %v555, %v554
        %v570 = vpack.c.b16 %v557, %v556
        %v571 = vpack.c.b16 %v559, %v558
        %v572 = vpack.c.b16 %v561, %v560
        %v573 = vpack.c.b16 %v563, %v562
        %v574 = vpack.c.b16 %v565, %v564
        %v575 = vpack.c.b16 %v567, %v566
        %v584 = vunpack.c.l.b16 %v318
        %v585 = vunpack.c.l.b16 %v319
        %v586 = vunpack.c.l.b16 %v320
        %v587 = vunpack.c.l.b16 %v321
        %v588 = vunpack.c.l.b16 %v322
        %v589 = vunpack.c.l.b16 %v323
        %v590 = vunpack.c.l.b16 %v324
        %v591 = vunpack.c.l.b16 %v325
        %v592 = vpack.c.b16 %v585, %v584
        %v593 = vpack.c.b16 %v587, %v586
        %v594 = vpack.c.b16 %v589, %v588
        %v595 = vpack.c.b16 %v591, %v590
        %v601 = vsel %vm414, %v568, 0
        %v604 = vsel %vm414, %v569, 0
        %v607 = vsel %vm414, %v570, 0
        %v610 = vsel %vm414, %v571, 0
        %v613 = vsel %vm414, %v572, 0
        %v616 = vsel %vm414, %v573, 0
        %v619 = vsel %vm414, %v574, 0
        %v622 = vsel %vm414, %v575, 0
        %624 = vmatprep.subr.bf16.mxu0 0
        %625 = vmatpush1.bf16.msra.mxu0 0
        %626 = vmatprep.subr.bf16.mxu0 0
        %627 = vmatpush1.bf16.msra.mxu0 0
        %628 = vmatprep.subr.bf16.mxu0 0
        %629 = vmatpush1.bf16.msra.mxu0 0
        %630 = vmatprep.subr.bf16.mxu0 0
        %631 = vmatpush1.bf16.msra.mxu0 0
        %632 = vmatprep.subr.bf16.mxu0 0
        %633 = vmatpush1.bf16.msra.mxu0 %v595
        %634 = vmatprep.subr.bf16.mxu0 0
        %635 = vmatpush1.bf16.msra.mxu0 %v594
        %636 = vmatprep.subr.bf16.mxu0 0
        %637 = vmatpush1.bf16.msra.mxu0 %v593
        %638 = vmatprep.subr.bf16.mxu0 0
        %639 = vmatpush1.bf16.msra.mxu0 %v592
        %640 = vmatprep.subr.bf16.mxu0 0
        %641 = vmatpush2.bf16.msra.mxu0 0
        %642 = vmatprep.subr.bf16.mxu0 0
        %643 = vmatpush2.bf16.msra.mxu0 0
        %644 = vmatprep.subr.bf16.mxu0 0
        %645 = vmatpush2.bf16.msra.mxu0 0
        %646 = vmatprep.subr.bf16.mxu0 0
        %647 = vmatpush2.bf16.msra.mxu0 0
        %648 = vmatprep.subr.bf16.mxu0 0
        %649 = vmatpush2.bf16.msra.mxu0 0
        %650 = vmatprep.subr.bf16.mxu0 0
        %651 = vmatpush2.bf16.msra.mxu0 0
        %652 = vmatprep.subr.bf16.mxu0 0
        %653 = vmatpush2.bf16.msra.mxu0 0
        %654 = vmatprep.subr.bf16.mxu0 0
        %655 = vmatpush2.bf16.msra.mxu0 0
        %656 = vmatprep.mubr.bf16.mxu0 0
        %657 = vmatmul.mubr.bf16.gmra.mxu0 %v601
        %v658 = vpop.f32.mrf.mxu0
        %v659 = vadd.f32 %v474, %v658
        %v660 = vpop.f32.mrf.mxu0
        %v661 = vpop.f32.mrf.mxu0
        %v662 = vadd.f32 %v477, %v661
        %v663 = vpop.f32.mrf.mxu0
        %664 = vmatprep.mubr.bf16.mxu0 0
        %665 = vmatmul.mubr.bf16.gmra.mxu0 %v604
        %v666 = vpop.f32.mrf.mxu0
        %v667 = vadd.f32 %v482, %v666
        %v668 = vpop.f32.mrf.mxu0
        %v669 = vpop.f32.mrf.mxu0
        %v670 = vadd.f32 %v485, %v669
        %v671 = vpop.f32.mrf.mxu0
        %672 = vmatprep.mubr.bf16.mxu0 0
        %673 = vmatmul.mubr.bf16.gmra.mxu0 %v607
        %v674 = vpop.f32.mrf.mxu0
        %v675 = vadd.f32 %v490, %v674
        %v676 = vpop.f32.mrf.mxu0
        %v677 = vpop.f32.mrf.mxu0
        %v678 = vadd.f32 %v493, %v677
        %v679 = vpop.f32.mrf.mxu0
        %680 = vmatprep.mubr.bf16.mxu0 0
        %681 = vmatmul.mubr.bf16.gmra.mxu0 %v610
        %v682 = vpop.f32.mrf.mxu0
        %v683 = vadd.f32 %v498, %v682
        %v684 = vpop.f32.mrf.mxu0
        %v685 = vpop.f32.mrf.mxu0
        %v686 = vadd.f32 %v501, %v685
        %v687 = vpop.f32.mrf.mxu0
        %688 = vmatprep.mubr.bf16.mxu0 0
        %689 = vmatmul.mubr.bf16.gmra.mxu0 %v613
        %v690 = vpop.f32.mrf.mxu0
        %v691 = vadd.f32 %v506, %v690
        %v692 = vpop.f32.mrf.mxu0
        %v693 = vpop.f32.mrf.mxu0
        %v694 = vadd.f32 %v509, %v693
        %v695 = vpop.f32.mrf.mxu0
        %696 = vmatprep.mubr.bf16.mxu0 0
        %697 = vmatmul.mubr.bf16.gmra.mxu0 %v616
        %v698 = vpop.f32.mrf.mxu0
        %v699 = vadd.f32 %v514, %v698
        %v700 = vpop.f32.mrf.mxu0
        %v701 = vpop.f32.mrf.mxu0
        %v702 = vadd.f32 %v517, %v701
        %v703 = vpop.f32.mrf.mxu0
        %704 = vmatprep.mubr.bf16.mxu0 0
        %705 = vmatmul.mubr.bf16.gmra.mxu0 %v619
        %v706 = vpop.f32.mrf.mxu0
        %v707 = vadd.f32 %v522, %v706
        %v708 = vpop.f32.mrf.mxu0
        %v709 = vpop.f32.mrf.mxu0
        %v710 = vadd.f32 %v525, %v709
        %v711 = vpop.f32.mrf.mxu0
        %712 = vmatprep.mubr.bf16.mxu0 0
        %713 = vmatmul.mubr.bf16.gmra.mxu0 %v622
        %v714 = vpop.f32.mrf.mxu0
        %v715 = vadd.f32 %v530, %v714
        %v716 = vpop.f32.mrf.mxu0
        %v717 = vpop.f32.mrf.mxu0
        %v718 = vadd.f32 %v533, %v717
        %v719 = vpop.f32.mrf.mxu0
        %720 = vdwg.mxu0
        %v721 = vld [vmem:[%s4] sm:$0x1]
        %v723 = vlaneseq
        %v724 = vshrl.u32 %v723, 7
        %v725 = vsub.s32 0, %v724
        %v726 = vrot.slane %v721, %v725
        %v728 = vadd.f32 %v659, %v726
        %v729 = vadd.f32 %v662, %v726
        %v730 = vadd.f32 %v667, %v726
        %v731 = vadd.f32 %v670, %v726
        %v732 = vadd.f32 %v675, %v726
        %v733 = vadd.f32 %v678, %v726
        %v734 = vadd.f32 %v683, %v726
        %v735 = vadd.f32 %v686, %v726
        %v736 = vadd.f32 %v691, %v726
        %v737 = vadd.f32 %v694, %v726
        %v738 = vadd.f32 %v699, %v726
        %v739 = vadd.f32 %v702, %v726
        %v740 = vadd.f32 %v707, %v726
        %v741 = vadd.f32 %v710, %v726
        %v742 = vadd.f32 %v715, %v726
        %v743 = vadd.f32 %v718, %v726
        %v744 = vmax.f32 %v728, 0.0
        %v745 = vmax.f32 %v729, 0.0
        %v746 = vmax.f32 %v730, 0.0
        %v747 = vmax.f32 %v731, 0.0
        %v748 = vmax.f32 %v732, 0.0
        %v749 = vmax.f32 %v733, 0.0
        %v750 = vmax.f32 %v734, 0.0
        %v751 = vmax.f32 %v735, 0.0
        %v752 = vmax.f32 %v736, 0.0
        %v753 = vmax.f32 %v737, 0.0
        %v754 = vmax.f32 %v738, 0.0
        %v755 = vmax.f32 %v739, 0.0
        %v756 = vmax.f32 %v740, 0.0
        %v757 = vmax.f32 %v741, 0.0
        %v758 = vmax.f32 %v742, 0.0
        %v759 = vmax.f32 %v743, 0.0
        %v760 = vld [vmem:[%s5] sm:$0x1]
        %v762 = vlaneseq
        %v763 = vshrl.u32 %v762, 7
        %v764 = vsub.s32 0, %v763
        %v765 = vrot.slane %v760, %v764
        %v767 = vmul.f32 %v744, %v765
        %v768 = vmul.f32 %v745, %v765
        %v769 = vmul.f32 %v746, %v765
        %v770 = vmul.f32 %v747, %v765
        %v771 = vmul.f32 %v748, %v765
        %v772 = vmul.f32 %v749, %v765
        %v773 = vmul.f32 %v750, %v765
        %v774 = vmul.f32 %v751, %v765
        %v775 = vmul.f32 %v752, %v765
        %v776 = vmul.f32 %v753, %v765
        %v777 = vmul.f32 %v754, %v765
        %v778 = vmul.f32 %v755, %v765
        %v779 = vmul.f32 %v756, %v765
        %v780 = vmul.f32 %v757, %v765
        %v781 = vmul.f32 %v758, %v765
        %v782 = vmul.f32 %v759, %v765
        %vm783 = vcmask 130048
        %v784 = vsel %vm783, %v767, 0.0
        %785 = vadd.xlane.f32.xlu0 %v784
        %v786 = vpop.xlane.xlu0 %785
        %v787 = vsel %vm783, %v768, 0.0
        %788 = vadd.xlane.f32.xlu0 %v787
        %v789 = vpop.xlane.xlu0 %788
        %v790 = vsel %vm783, %v769, 0.0
        %791 = vadd.xlane.f32.xlu0 %v790
        %v792 = vpop.xlane.xlu0 %791
        %v793 = vsel %vm783, %v770, 0.0
        %794 = vadd.xlane.f32.xlu0 %v793
        %v795 = vpop.xlane.xlu0 %794
        %v796 = vsel %vm783, %v771, 0.0
        %797 = vadd.xlane.f32.xlu0 %v796
        %v798 = vpop.xlane.xlu0 %797
        %v799 = vsel %vm783, %v772, 0.0
        %800 = vadd.xlane.f32.xlu0 %v799
        %v801 = vpop.xlane.xlu0 %800
        %v802 = vsel %vm783, %v773, 0.0
        %803 = vadd.xlane.f32.xlu0 %v802
        %v804 = vpop.xlane.xlu0 %803
        %v805 = vsel %vm783, %v774, 0.0
        %806 = vadd.xlane.f32.xlu0 %v805
        %v807 = vpop.xlane.xlu0 %806
        %v808 = vsel %vm783, %v775, 0.0
        %809 = vadd.xlane.f32.xlu0 %v808
        %v810 = vpop.xlane.xlu0 %809
        %v811 = vsel %vm783, %v776, 0.0
        %812 = vadd.xlane.f32.xlu0 %v811
        %v813 = vpop.xlane.xlu0 %812
        %v814 = vsel %vm783, %v777, 0.0
        %815 = vadd.xlane.f32.xlu0 %v814
        %v816 = vpop.xlane.xlu0 %815
        %v817 = vsel %vm783, %v778, 0.0
        %818 = vadd.xlane.f32.xlu0 %v817
        %v819 = vpop.xlane.xlu0 %818
        %v820 = vsel %vm783, %v779, 0.0
        %821 = vadd.xlane.f32.xlu0 %v820
        %v822 = vpop.xlane.xlu0 %821
        %v823 = vsel %vm783, %v780, 0.0
        %824 = vadd.xlane.f32.xlu0 %v823
        %v825 = vpop.xlane.xlu0 %824
        %v826 = vsel %vm783, %v781, 0.0
        %827 = vadd.xlane.f32.xlu0 %v826
        %v828 = vpop.xlane.xlu0 %827
        %v829 = vsel %vm783, %v782, 0.0
        %830 = vadd.xlane.f32.xlu0 %v829
        %v831 = vpop.xlane.xlu0 %830
        %s832 = sld [smem:[#allocation2]]
        %v833 = vstv %s832
        %v834 = vadd.f32 %v786, %v833
        %v835 = vadd.f32 %v789, %v833
        %v836 = vadd.f32 %v792, %v833
        %v837 = vadd.f32 %v795, %v833
        %v838 = vadd.f32 %v798, %v833
        %v839 = vadd.f32 %v801, %v833
        %v840 = vadd.f32 %v804, %v833
        %v841 = vadd.f32 %v807, %v833
        %v842 = vadd.f32 %v810, %v833
        %v843 = vadd.f32 %v813, %v833
        %v844 = vadd.f32 %v816, %v833
        %v845 = vadd.f32 %v819, %v833
        %v846 = vadd.f32 %v822, %v833
        %v847 = vadd.f32 %v825, %v833
        %v848 = vadd.f32 %v828, %v833
        %v849 = vadd.f32 %v831, %v833
        %v866 = vlaneseq
        %v867 = vand.u32 %v866, 127
        %v868 = vlaneseq
        %v869 = vshrl.u32 %v868, 7
        %v870 = vsub.s32 %v867, %v869
        %v871 = vrot.slane %v834, %v870
        %v872 = vadd.s32 %v867, 4294967288
        %v873 = vlaneseq
        %v874 = vshrl.u32 %v873, 7
        %v875 = vsub.s32 %v872, %v874
        %v876 = vrot.slane %v835, %v875
        %vm877 = vcmask 130112
        %v878 = vsel %vm877, %v876, %v871
        %v879 = vadd.s32 %v867, 4294967280
        %v880 = vlaneseq
        %v881 = vshrl.u32 %v880, 7
        %v882 = vsub.s32 %v879, %v881
        %v883 = vrot.slane %v836, %v882
        %vm884 = vcmask 195712
        %v885 = vsel %vm884, %v883, %v878
        %v886 = vadd.s32 %v867, 4294967272
        %v887 = vlaneseq
        %v888 = vshrl.u32 %v887, 7
        %v889 = vsub.s32 %v886, %v888
        %v890 = vrot.slane %v837, %v889
        %vm891 = vcmask 261312
        %v892 = vsel %vm891, %v890, %v885
        %v893 = vadd.s32 %v867, 4294967264
        %v894 = vlaneseq
        %v895 = vshrl.u32 %v894, 7
        %v896 = vsub.s32 %v893, %v895
        %v897 = vrot.slane %v838, %v896
        %vm898 = vcmask 326912
        %v899 = vsel %vm898, %v897, %v892
        %v900 = vadd.s32 %v867, 4294967256
        %v901 = vlaneseq
        %v902 = vshrl.u32 %v901, 7
        %v903 = vsub.s32 %v900, %v902
        %v904 = vrot.slane %v839, %v903
        %vm905 = vcmask 392512
        %v906 = vsel %vm905, %v904, %v899
        %v907 = vadd.s32 %v867, 4294967248
        %v908 = vlaneseq
        %v909 = vshrl.u32 %v908, 7
        %v910 = vsub.s32 %v907, %v909
        %v911 = vrot.slane %v840, %v910
        %vm912 = vcmask 458112
        %v913 = vsel %vm912, %v911, %v906
        %v914 = vadd.s32 %v867, 4294967240
        %v915 = vlaneseq
        %v916 = vshrl.u32 %v915, 7
        %v917 = vsub.s32 %v914, %v916
        %v918 = vrot.slane %v841, %v917
        %vm919 = vcmask 523712
        %v920 = vsel %vm919, %v918, %v913
        %v921 = vadd.s32 %v867, 4294967232
        %v922 = vlaneseq
        %v923 = vshrl.u32 %v922, 7
        %v924 = vsub.s32 %v921, %v923
        %v925 = vrot.slane %v842, %v924
        %vm926 = vcmask 589312
        %v927 = vsel %vm926, %v925, %v920
        %v928 = vadd.s32 %v867, 4294967224
        %v929 = vlaneseq
        %v930 = vshrl.u32 %v929, 7
        %v931 = vsub.s32 %v928, %v930
        %v932 = vrot.slane %v843, %v931
        %vm933 = vcmask 654912
        %v934 = vsel %vm933, %v932, %v927
        %v935 = vadd.s32 %v867, 4294967216
        %v936 = vlaneseq
        %v937 = vshrl.u32 %v936, 7
        %v938 = vsub.s32 %v935, %v937
        %v939 = vrot.slane %v844, %v938
        %vm940 = vcmask 720512
        %v941 = vsel %vm940, %v939, %v934
        %v942 = vadd.s32 %v867, 4294967208
        %v943 = vlaneseq
        %v944 = vshrl.u32 %v943, 7
        %v945 = vsub.s32 %v942, %v944
        %v946 = vrot.slane %v845, %v945
        %vm947 = vcmask 786112
        %v948 = vsel %vm947, %v946, %v941
        %v949 = vadd.s32 %v867, 4294967200
        %v950 = vlaneseq
        %v951 = vshrl.u32 %v950, 7
        %v952 = vsub.s32 %v949, %v951
        %v953 = vrot.slane %v846, %v952
        %vm954 = vcmask 851712
        %v955 = vsel %vm954, %v953, %v948
        %v956 = vadd.s32 %v867, 4294967192
        %v957 = vlaneseq
        %v958 = vshrl.u32 %v957, 7
        %v959 = vsub.s32 %v956, %v958
        %v960 = vrot.slane %v847, %v959
        %vm961 = vcmask 917312
        %v962 = vsel %vm961, %v960, %v955
        %v963 = vadd.s32 %v867, 4294967184
        %v964 = vlaneseq
        %v965 = vshrl.u32 %v964, 7
        %v966 = vsub.s32 %v963, %v965
        %v967 = vrot.slane %v848, %v966
        %vm968 = vcmask 982912
        %v969 = vsel %vm968, %v967, %v962
        %v970 = vadd.s32 %v867, 4294967176
        %v971 = vlaneseq
        %v972 = vshrl.u32 %v971, 7
        %v973 = vsub.s32 %v970, %v972
        %v974 = vrot.slane %v849, %v973
        %vm975 = vcmask 1048512
        %v976 = vsel %vm975, %v974, %v969
        %978 = vst [vmem:[%s288] sm:$0x1] %v976
        %s979 = sand.u32 %s187, 1
        %s980 = scalar_lea.sflag [#allocation4], %s979
        %s981 = sand.u32 %s187, 1
        %s982 = scalar_lea.vmem [#allocation3], %s981
        // Predicated region
        $region49: #{tpu_custom_call.1} parent=47 // pred_check
          %p983 = pneg %p197
        $region50: #{tpu_custom_call.1} parent=47 // pred_check_branch
          %985 = sbr.rel (%p983) target = $region52
        $region51: #{tpu_custom_call.1} parent=47 // pred_region
          %s987 = ssub.s32 16, 16
          %988 = vsyncadd %s980, %s987
          %s989 = smul.addr %s22, 16
          %s990 = scalar_lea.hbm %s7, %s989
          %s992 = sshll.u32 %s982, 4
          %s993 = int_to_ptr.vmem [resolvable:$true] %s992
          %995 = dma.vmem_to_hbm [thread:$0]  %s993, 16, %s990, %s980
        $region52: #{tpu_custom_call.1} parent=47 // pred_fallthru
          _
      $region48: #{tpu_custom_call.1} parent=5 // pred_fallthru
        _
      %p996 = scmp.le.s32.totalorder 2, %s17
      // Predicated region
      $region53: #{tpu_custom_call.1} parent=5 // pred_check
        %p997 = pneg %p996
      $region54: #{tpu_custom_call.1} parent=5 // pred_check_branch
        %999 = sbr.rel (%p997) target = $region56
      $region55: #{tpu_custom_call.1} parent=5 // pred_region
        %s1000 = ssub.s32 %s17, 2
        // Predicated region
        $region57: #{tpu_custom_call.1} parent=55 // pred_check
          %p1001 = pneg %p203
        $region58: #{tpu_custom_call.1} parent=55 // pred_check_branch
          %1003 = sbr.rel (%p1001) target = $region60
        $region59: #{tpu_custom_call.1} parent=55 // pred_region
          %s1004 = sand.u32 %s188, 1
          %s1005 = scalar_lea.sflag [#allocation4], %s1004
          %s1006 = sand.u32 %s188, 1
          %s1007 = scalar_lea.vmem [#allocation3], %s1006
          %1008 = dma.done %s1005, 16
        $region60: #{tpu_custom_call.1} parent=55 // pred_fallthru
          _
      $region56: #{tpu_custom_call.1} parent=5 // pred_fallthru
        _
    $region6: #{tpu_custom_call.1} parent=1 // loop_footer
      %s21 = sadd.s32 1, %s17
    $region7: #{tpu_custom_call.1} parent=1 // loop_footer_branch
      %16 = sbr.rel target = $region3
    $region8: #{tpu_custom_call.1} parent=1 // loop_exit
      _
    %1009 = vsyncpa [#allocation4], 1
    %s1010 = scalar_lea.sflag [#allocation4], 1
    %1011 = vsyncpa %s1010, 1

</llo_original>
